<compile_context>
chip_gen: v6e
topology: v6e:2x2x1
jax: 0.10.0
libtpu: 0.0.40
codegen_flags: <defaults>
</compile_context>

<pallas_src>
import numpy as np
import jax
import jax.numpy as jnp
from jax import lax
from jax.experimental import pallas as pl
from jax.experimental.pallas import tpu as pltpu


# ----------------------------------------------------------------------------
# Module plumbing
# ----------------------------------------------------------------------------
class RecipeNetData(object):
    def __init__(self) -> None:
        pass


class Args(object):
    pass


def make_args():
    a = Args()
    a.num_grain_types = 16
    a.grain_type_embed_size = 8
    a.num_adjunct_types = 12
    a.adjunct_type_embed_size = 8
    a.num_hop_types = 20
    a.hop_type_embed_size = 8
    a.num_misc_types = 10
    a.misc_type_embed_size = 8
    a.num_microorganism_types = 8
    a.microorganism_type_embed_size = 8
    a.num_mash_step_types = 6
    a.num_hop_stage_types = 4
    a.num_misc_stage_types = 5
    a.num_mo_stage_types = 3
    return a


def init_params(key, args):
    ks = jax.random.split(key, 5)
    # Match nn.Embedding default init: N(0, 1).
    return {
        "grain": jax.random.normal(
            ks[0], (args.num_grain_types, args.grain_type_embed_size), jnp.float32),
        "adjunct": jax.random.normal(
            ks[1], (args.num_adjunct_types, args.adjunct_type_embed_size), jnp.float32),
        "hop": jax.random.normal(
            ks[2], (args.num_hop_types, args.hop_type_embed_size), jnp.float32),
        "misc": jax.random.normal(
            ks[3], (args.num_misc_types, args.misc_type_embed_size), jnp.float32),
        "mo": jax.random.normal(
            ks[4], (args.num_microorganism_types, args.microorganism_type_embed_size),
            jnp.float32),
    }


_EMBED_HEADS = ("grain", "adjunct", "hop", "misc", "mo")
_STAGE_HEADS = ("ms", "hop_stage", "misc_stage", "mo_stage")
_IDX_ORDER = ("ms", "grain", "adjunct", "hop", "hop_stage",
              "misc", "misc_stage", "mo", "mo_stage")
_FLOAT_SEGS = ("toplvl", "ms_times", "ms_temps", "fs_times", "fs_temps",
               "grain_amts", "adjunct_amts", "hop_times", "hop_conc",
               "misc_times", "misc_amts")
_STAGE_TARGET = {"ms": "ms_onehot", "hop_stage": "hop_stage_onehot",
                 "misc_stage": "misc_stage_onehot", "mo_stage": "mo_stage_onehot"}


def _round_up(n, m):
    return ((n + m - 1) // m) * m


# ----------------------------------------------------------------------------
# Static layout (all offsets are compile-time Python ints)
# ----------------------------------------------------------------------------
def _layout(args, x):
    B = x["boil_time"].shape[0]
    S = {
        "ms": x["mash_step_type_inds"].shape[1],
        "fs": x["ferment_stage_times"].shape[1],
        "grain": x["grain_core_type_inds"].shape[1],
        "adjunct": x["adjunct_core_type_inds"].shape[1],
        "hop": x["hop_type_inds"].shape[1],
        "hop_stage": x["hop_stage_type_inds"].shape[1],
        "misc": x["misc_type_inds"].shape[1],
        "misc_stage": x["misc_stage_inds"].shape[1],
        "mo": x["mo_type_inds"].shape[1],
        "mo_stage": x["mo_stage_inds"].shape[1],
    }
    V = {
        "ms": args.num_mash_step_types,
        "grain": args.num_grain_types,
        "adjunct": args.num_adjunct_types,
        "hop": args.num_hop_types,
        "hop_stage": args.num_hop_stage_types,
        "misc": args.num_misc_types,
        "misc_stage": args.num_misc_stage_types,
        "mo": args.num_microorganism_types,
        "mo_stage": args.num_mo_stage_types,
    }
    E = {
        "grain": args.grain_type_embed_size,
        "adjunct": args.adjunct_type_embed_size,
        "hop": args.hop_type_embed_size,
        "misc": args.misc_type_embed_size,
        "mo": args.microorganism_type_embed_size,
    }

    # x_out column segments, in the exact order of the PyTorch torch.cat.
    segs = [
        ("toplvl", 3),
        ("ms_onehot", S["ms"] * V["ms"]),
        ("ms_times", S["ms"]),
        ("ms_temps", S["ms"]),
        ("fs_times", S["fs"]),
        ("fs_temps", S["fs"]),
        ("grain_embed", S["grain"] * E["grain"]),
        ("grain_amts", S["grain"]),
        ("adjunct_embed", S["adjunct"] * E["adjunct"]),
        ("adjunct_amts", S["adjunct"]),
        ("hop_embed", S["hop"] * E["hop"]),
        ("hop_stage_onehot", S["hop_stage"] * V["hop_stage"]),
        ("hop_times", S["hop"]),
        ("hop_conc", S["hop"]),
        ("misc_embed", S["misc"] * E["misc"]),
        ("misc_stage_onehot", S["misc_stage"] * V["misc_stage"]),
        ("misc_times", S["misc"]),
        ("misc_amts", S["misc"]),
        ("mo_embed", S["mo"] * E["mo"]),
        ("mo_stage_onehot", S["mo_stage"] * V["mo_stage"]),
    ]
    xoff, o = {}, 0
    for name, w in segs:
        xoff[name] = (o, o + w)
        o += w
    x_width = o

    # Second output: flattened one-hots of the 5 embedding heads.
    ohoff, o = {}, 0
    for h in _EMBED_HEADS:
        w = S[h] * V[h]
        ohoff[h] = (o, o + w)
        o += w
    oh_width = o

    # Concatenated int32 index tensor column offsets.
    idxoff, o = {}, 0
    for h in _IDX_ORDER:
        idxoff[h] = (o, o + S[h])
        o += S[h]
    idx_width = o

    float_width = sum(xoff[n][1] - xoff[n][0] for n in _FLOAT_SEGS)
    pad = max(128, _round_up(max(x_width, oh_width), 128))   # lane-dense width

    return dict(B=B, S=S, V=V, E=E, xoff=xoff, x_width=x_width,
                ohoff=ohoff, oh_width=oh_width,
                idxoff=idxoff, idx_width=idx_width,
                float_width=float_width, pad=pad)


def _plans(L):
    # (idx_col0, n_slots, n_classes, out_col_base) per head -- python constants.
    embed_plan = tuple(
        (L["idxoff"][h][0], L["S"][h], L["V"][h], L["ohoff"][h][0])
        for h in _EMBED_HEADS)
    stage_plan = tuple(
        (L["idxoff"][h][0], L["S"][h], L["V"][h], L["xoff"][_STAGE_TARGET[h]][0])
        for h in _STAGE_HEADS)
    return embed_plan, stage_plan


def _build_embed_table(params, L):
    """[pad, pad] block-diagonal table: (flat one-hot) @ table lands every
    embedding row directly at its final x_out column range (gather-as-matmul,
    exact for 0/1 weights).  NOTE: pure function of the parameters; in a real
    model this is built once per parameter update, not per forward call."""
    pad = L["pad"]
    blocks = []
    for head in _EMBED_HEADS:
        t = params[head].astype(jnp.float32)                       # [V, E]
        Sh = L["S"][head]
        blk = jnp.kron(jnp.eye(Sh, dtype=jnp.float32), t)          # [Sh*V, Sh*E]
        c0 = L["xoff"][head + "_embed"][0]
        blk = jnp.pad(blk, ((0, 0), (c0, pad - c0 - blk.shape[1])))
        blocks.append(blk)
    tbl = jnp.concatenate(blocks, axis=0)                           # [oh_width, pad]
    return jnp.pad(tbl, ((0, pad - tbl.shape[0]), (0, 0)))          # [pad, pad]


def _build_float_table(L):
    """Constant [float_width, pad] 0/1 matrix scattering the concatenated
    float features to their x_out columns via one small matmul."""
    P = np.zeros((L["float_width"], L["pad"]), np.float32)
    r = 0
    for name in _FLOAT_SEGS:
        a, b = L["xoff"][name]
        w = b - a
        P[r:r + w, a:b] = np.eye(w, dtype=np.float32)
        r += w
    return jnp.asarray(P)


# ----------------------------------------------------------------------------
# The fused Pallas kernel
# ----------------------------------------------------------------------------
def _make_fused_kernel(embed_plan, stage_plan):
    def kernel(idx_ref, floats_ref, embed_tbl_ref, float_tbl_ref, x_ref, oh_ref):
        Bb, W = x_ref.shape                      # W == pad (lane-dense)
        idx = idx_ref[...]                       # [Bb, idx_width] int32
        cols = lax.broadcasted_iota(jnp.int32, (Bb, W), 1)

        def scatter(acc, plan):
            # Adds 1.0 at column (base + s*num_classes + idx[:, c0+s]) per slot.
            for (c0, n_slots, n_classes, base) in plan:
                for s in range(n_slots):
                    tgt = idx[:, c0 + s:c0 + s + 1] + (base + s * n_classes)
                    acc = acc + (cols == tgt).astype(jnp.float32)
            return acc

        # ---- output 2: flattened one-hots of the 5 embedding heads (VPU) ----
        oh = scatter(jnp.zeros((Bb, W), jnp.float32), embed_plan)
        oh_ref[...] = oh                         # full-lane dense store

        # ---- output 1: the full encoder row ----
        # One MXU matmul places all 5 heads' embeddings at their final columns;
        # a second tiny 0/1 matmul scatters the float features; the remaining
        # stage/type one-hot segments are generated in place with iota compares.
        x = jnp.dot(oh, embed_tbl_ref[...], preferred_element_type=jnp.float32)
        x = x + jnp.dot(floats_ref[...], float_tbl_ref[...],
                        preferred_element_type=jnp.float32)
        x = scatter(x, stage_plan)
        x_ref[...] = x                           # full-lane dense store

    return kernel


# ----------------------------------------------------------------------------
# Forward pass (wrapper = layout bookkeeping + one pallas_call + slicing)
# ----------------------------------------------------------------------------
def recipe_net_head_encoder_forward(params, args, x):
    L = _layout(args, x)
    B, pad, S, xoff, ohoff = L["B"], L["pad"], L["S"], L["xoff"], L["ohoff"]

    toplvl = jnp.stack(
        [x["boil_time"], x["mash_ph"], x["sparge_temp"]], axis=1).astype(jnp.float32)

    idx_all = jnp.concatenate([
        x["mash_step_type_inds"], x["grain_core_type_inds"],
        x["adjunct_core_type_inds"], x["hop_type_inds"],
        x["hop_stage_type_inds"], x["misc_type_inds"], x["misc_stage_inds"],
        x["mo_type_inds"], x["mo_stage_inds"],
    ], axis=1).astype(jnp.int32)                                    # [B, 29]

    floats = jnp.concatenate([
        toplvl,
        x["mash_step_times"], x["mash_step_avg_temps"],
        x["ferment_stage_times"], x["ferment_stage_temps"],
        x["grain_amts"], x["adjunct_amts"],
        x["hop_times"], x["hop_concentrations"],
        x["misc_times"], x["misc_amts"],
    ], axis=1).astype(jnp.float32)                                  # [B, 36]

    embed_tbl = _build_embed_table(params, L)                        # [pad, pad]
    float_tbl = _build_float_table(L)                                # [36, pad]
    embed_plan, stage_plan = _plans(L)

    # Batch grid: single block at small B; 512-row parallel blocks at large B.
    block_b = B if B <= 512 else 512
    grid = (pl.cdiv(B, block_b),)

    x_pad, oh_pad = pl.pallas_call(
        _make_fused_kernel(embed_plan, stage_plan),
        grid=grid,
        in_specs=[
            pl.BlockSpec((block_b, L["idx_width"]), lambda i: (i, 0)),
            pl.BlockSpec((block_b, L["float_width"]), lambda i: (i, 0)),
            pl.BlockSpec((pad, pad), lambda i: (0, 0)),
            pl.BlockSpec((L["float_width"], pad), lambda i: (0, 0)),
        ],
        out_specs=(
            pl.BlockSpec((block_b, pad), lambda i: (i, 0)),
            pl.BlockSpec((block_b, pad), lambda i: (i, 0)),
        ),
        out_shape=(
            jax.ShapeDtypeStruct((B, pad), jnp.float32),
            jax.ShapeDtypeStruct((B, pad), jnp.float32),
        ),
        compiler_params=pltpu.CompilerParams(
            dimension_semantics=("parallel",)),
    )(idx_all, floats, embed_tbl, float_tbl)

    # --- heads: pure static slices / reshapes of the two (padded) outputs ---
    def seg(name):
        a, b = xoff[name]
        return x_pad[:, a:b]

    def span(first, last):
        return x_pad[:, xoff[first][0]:xoff[last][1]]

    def oh3(name, n_classes):
        a, b = ohoff[name]
        return oh_pad[:, a:b].reshape(B, S[name], n_classes)

    heads = RecipeNetData()
    heads.x_toplvl = seg("toplvl")
    heads.enc_mash_step_type_onehot = seg("ms_onehot")
    heads.x_mash_steps = span("ms_onehot", "ms_temps")
    heads.x_ferment_stages = span("fs_times", "fs_temps")
    heads.enc_grain_type_embed = seg("grain_embed")
    heads.enc_grain_type_onehot = oh3("grain", args.num_grain_types)
    heads.x_grains = span("grain_embed", "grain_amts")
    heads.enc_adjunct_type_embed = seg("adjunct_embed")
    heads.enc_adjunct_type_onehot = oh3("adjunct", args.num_adjunct_types)
    heads.x_adjuncts = span("adjunct_embed", "adjunct_amts")
    heads.enc_hop_type_embed = seg("hop_embed")
    heads.enc_hop_type_onehot = oh3("hop", args.num_hop_types)
    heads.enc_hop_stage_type_onehot = seg("hop_stage_onehot")
    heads.x_hops = span("hop_embed", "hop_conc")
    heads.enc_misc_type_embed = seg("misc_embed")
    heads.enc_misc_type_onehot = oh3("misc", args.num_misc_types)
    heads.enc_misc_stage_type_onehot = seg("misc_stage_onehot")
    heads.x_miscs = span("misc_embed", "misc_amts")
    heads.enc_mo_type_embed = seg("mo_embed")
    heads.enc_mo_type_onehot = oh3("mo", args.num_microorganism_types)
    heads.enc_mo_stage_type_onehot = seg("mo_stage_onehot")
    heads.x_mos = span("mo_embed", "mo_stage_onehot")

    x_out = x_pad[:, :L["x_width"]]
    return x_out, heads


# ----------------------------------------------------------------------------
# Pure-JAX reference (mirrors the PyTorch forward) + example inputs
# ----------------------------------------------------------------------------
def _reference_forward(params, args, x):
    B = x["boil_time"].shape[0]
    oh = lambda idx, n: jax.nn.one_hot(idx, n, dtype=jnp.float32)
    emb = lambda t, idx: jnp.take(t.astype(jnp.float32), idx, axis=0)
    parts = [
        jnp.stack([x["boil_time"], x["mash_ph"], x["sparge_temp"]], axis=1),
        oh(x["mash_step_type_inds"], args.num_mash_step_types).reshape(B, -1),
        x["mash_step_times"], x["mash_step_avg_temps"],
        x["ferment_stage_times"], x["ferment_stage_temps"],
        emb(params["grain"], x["grain_core_type_inds"]).reshape(B, -1),
        x["grain_amts"],
        emb(params["adjunct"], x["adjunct_core_type_inds"]).reshape(B, -1),
        x["adjunct_amts"],
        emb(params["hop"], x["hop_type_inds"]).reshape(B, -1),
        oh(x["hop_stage_type_inds"], args.num_hop_stage_types).reshape(B, -1),
        x["hop_times"], x["hop_concentrations"],
        emb(params["misc"], x["misc_type_inds"]).reshape(B, -1),
        oh(x["misc_stage_inds"], args.num_misc_stage_types).reshape(B, -1),
        x["misc_times"], x["misc_amts"],
        emb(params["mo"], x["mo_type_inds"]).reshape(B, -1),
        oh(x["mo_stage_inds"], args.num_mo_stage_types).reshape(B, -1),
    ]
    return jnp.concatenate(parts, axis=1)


def make_inputs(key, args, B=2):
    num_mash_steps = 4
    num_ferment_stages = 2
    num_grain_slots = 4
    num_adjunct_slots = 3
    num_hop_slots = 4
    num_misc_slots = 3
    num_mo_slots = 2

    keys = jax.random.split(key, 32)
    k = iter(keys)
    f = lambda shape: jax.random.uniform(next(k), shape, jnp.float32)
    i = lambda shape, n: jax.random.randint(next(k), shape, 0, n, jnp.int32)

    return {
        "boil_time": f((B,)),
        "mash_ph": f((B,)),
        "sparge_temp": f((B,)),
        "mash_step_type_inds": i((B, num_mash_steps), args.num_mash_step_types),
        "mash_step_times": f((B, num_mash_steps)),
        "mash_step_avg_temps": f((B, num_mash_steps)),
        "ferment_stage_times": f((B, num_ferment_stages)),
        "ferment_stage_temps": f((B, num_ferment_stages)),
        "grain_core_type_inds": i((B, num_grain_slots), args.num_grain_types),
        "grain_amts": f((B, num_grain_slots)),
        "adjunct_core_type_inds": i((B, num_adjunct_slots), args.num_adjunct_types),
        "adjunct_amts": f((B, num_adjunct_slots)),
        "hop_type_inds": i((B, num_hop_slots), args.num_hop_types),
        "hop_stage_type_inds": i((B, num_hop_slots), args.num_hop_stage_types),
        "hop_times": f((B, num_hop_slots)),
        "hop_concentrations": f((B, num_hop_slots)),
        "misc_type_inds": i((B, num_misc_slots), args.num_misc_types),
        "misc_stage_inds": i((B, num_misc_slots), args.num_misc_stage_types),
        "misc_times": f((B, num_misc_slots)),
        "misc_amts": f((B, num_misc_slots)),
        "mo_type_inds": i((B, num_mo_slots), args.num_microorganism_types),
        "mo_stage_inds": i((B, num_mo_slots), args.num_mo_stage_types),
    }


if __name__ == "__main__":
    key = jax.random.PRNGKey(0)
    k_params, k_inputs = jax.random.split(key)
    args = make_args()
    params = init_params(k_params, args)
    x_in = make_inputs(k_inputs, args, B=2)

    x_out, heads = recipe_net_head_encoder_forward(params, args, x_in)
    x_out = jax.block_until_ready(x_out)

    # Full correctness check against a pure-JAX reference of the PyTorch module.
    ref_x = _reference_forward(params, args, x_in)
    assert x_out.shape == ref_x.shape, (x_out.shape, ref_x.shape)
    assert jnp.allclose(x_out, ref_x, atol=1e-5), \
        float(jnp.max(jnp.abs(x_out - ref_x)))

    # Spot-check heads fields.
    ref_g_embed = jnp.take(params["grain"], x_in["grain_core_type_inds"], axis=0)
    assert jnp.allclose(heads.enc_grain_type_embed, ref_g_embed.reshape(2, -1),
                        atol=1e-5)
    ref_g_oh = jax.nn.one_hot(x_in["grain_core_type_inds"], args.num_grain_types,
                              dtype=jnp.float32)
    assert jnp.allclose(heads.enc_grain_type_onehot, ref_g_oh)
    ref_ms_oh = jax.nn.one_hot(x_in["mash_step_type_inds"],
                               args.num_mash_step_types, dtype=jnp.float32)
    assert jnp.allclose(heads.enc_mash_step_type_onehot, ref_ms_oh.reshape(2, -1))
    ref_mos_oh = jax.nn.one_hot(x_in["mo_stage_inds"], args.num_mo_stage_types,
                                dtype=jnp.float32)
    assert jnp.allclose(heads.enc_mo_stage_type_onehot, ref_mos_oh.reshape(2, -1))
    ref_hop_oh = jax.nn.one_hot(x_in["hop_type_inds"], args.num_hop_types,
                                dtype=jnp.float32)
    assert jnp.allclose(heads.enc_hop_type_onehot, ref_hop_oh)

    expected_width = (
        3
        + 4 * args.num_mash_step_types + 4 + 4
        + 2 + 2
        + 4 * args.grain_type_embed_size + 4
        + 3 * args.adjunct_type_embed_size + 3
        + 4 * args.hop_type_embed_size + 4 * args.num_hop_stage_types + 4 + 4
        + 3 * args.misc_type_embed_size + 3 * args.num_misc_stage_types + 3 + 3
        + 2 * args.microorganism_type_embed_size + 2 * args.num_mo_stage_types
    )
    assert x_out.shape == (2, expected_width), x_out.shape

    print("KERNEL_OK")
</pallas_src>

<mosaic_0001>
module attributes {stable_mosaic.version = 11 : i64} {
  func.func @kernel(%arg0: i32, %arg1: memref<2x29xi32, #tpu.memory_space<vmem>>, %arg2: memref<2x36xf32, #tpu.memory_space<vmem>>, %arg3: memref<256x256xf32, #tpu.memory_space<vmem>>, %arg4: memref<36x256xf32, #tpu.memory_space<vmem>>, %arg5: memref<2x256xf32, #tpu.memory_space<vmem>>, %arg6: memref<2x256xf32, #tpu.memory_space<vmem>>) attributes {dimension_semantics = [#tpu.dimension_semantics<parallel>], iteration_bounds = array<i64: 1>, scalar_prefetch = 0 : i64, scratch_operands = 0 : i64, tpu.core_type = #tpu.core_type<tc>, window_params = [{transform_indices = @transform_0, window_bounds = array<i64: 2, 29>}, {transform_indices = @transform_1, window_bounds = array<i64: 2, 36>}, {pipeline_mode = #tpu.pipeline_mode<synchronous>, transform_indices = @transform_2, window_bounds = array<i64: 256, 256>}, {pipeline_mode = #tpu.pipeline_mode<synchronous>, transform_indices = @transform_3, window_bounds = array<i64: 36, 256>}, {transform_indices = @transform_4, window_bounds = array<i64: 2, 256>}, {transform_indices = @transform_5, window_bounds = array<i64: 2, 256>}]} {
    %c0 = arith.constant 0 : index
    %c0_0 = arith.constant 0 : index
    %0 = vector.load %arg1[%c0, %c0_0] : memref<2x29xi32, #tpu.memory_space<vmem>>, vector<2x29xi32>
    %1 = tpu.iota {dimensions = array<i32: 1>} : vector<2x256xi32>
    %cst = arith.constant 0.000000e+00 : f32
    %2 = vector.broadcast %cst : f32 to vector<2x256xf32>
    %3 = vector.extract_strided_slice %0 {offsets = [0, 4], sizes = [2, 1], strides = [1, 1]} : vector<2x29xi32> to vector<2x1xi32>
    %c0_i32 = arith.constant 0 : i32
    %4 = vector.broadcast %c0_i32 : i32 to vector<2x1xi32>
    %5 = arith.addi %3, %4 : vector<2x1xi32>
    %6 = vector.broadcast %5 : vector<2x1xi32> to vector<2x256xi32>
    %7 = arith.cmpi eq, %1, %6 : vector<2x256xi32>
    %8 = arith.extui %7 : vector<2x256xi1> to vector<2x256xi32>
    %9 = arith.sitofp %8 : vector<2x256xi32> to vector<2x256xf32>
    %10 = arith.addf %2, %9 : vector<2x256xf32>
    %11 = vector.extract_strided_slice %0 {offsets = [0, 5], sizes = [2, 1], strides = [1, 1]} : vector<2x29xi32> to vector<2x1xi32>
    %c16_i32 = arith.constant 16 : i32
    %12 = vector.broadcast %c16_i32 : i32 to vector<2x1xi32>
    %13 = arith.addi %11, %12 : vector<2x1xi32>
    %14 = vector.broadcast %13 : vector<2x1xi32> to vector<2x256xi32>
    %15 = arith.cmpi eq, %1, %14 : vector<2x256xi32>
    %16 = arith.extui %15 : vector<2x256xi1> to vector<2x256xi32>
    %17 = arith.sitofp %16 : vector<2x256xi32> to vector<2x256xf32>
    %18 = arith.addf %10, %17 : vector<2x256xf32>
    %19 = vector.extract_strided_slice %0 {offsets = [0, 6], sizes = [2, 1], strides = [1, 1]} : vector<2x29xi32> to vector<2x1xi32>
    %c32_i32 = arith.constant 32 : i32
    %20 = vector.broadcast %c32_i32 : i32 to vector<2x1xi32>
    %21 = arith.addi %19, %20 : vector<2x1xi32>
    %22 = vector.broadcast %21 : vector<2x1xi32> to vector<2x256xi32>
    %23 = arith.cmpi eq, %1, %22 : vector<2x256xi32>
    %24 = arith.extui %23 : vector<2x256xi1> to vector<2x256xi32>
    %25 = arith.sitofp %24 : vector<2x256xi32> to vector<2x256xf32>
    %26 = arith.addf %18, %25 : vector<2x256xf32>
    %27 = vector.extract_strided_slice %0 {offsets = [0, 7], sizes = [2, 1], strides = [1, 1]} : vector<2x29xi32> to vector<2x1xi32>
    %c48_i32 = arith.constant 48 : i32
    %28 = vector.broadcast %c48_i32 : i32 to vector<2x1xi32>
    %29 = arith.addi %27, %28 : vector<2x1xi32>
    %30 = vector.broadcast %29 : vector<2x1xi32> to vector<2x256xi32>
    %31 = arith.cmpi eq, %1, %30 : vector<2x256xi32>
    %32 = arith.extui %31 : vector<2x256xi1> to vector<2x256xi32>
    %33 = arith.sitofp %32 : vector<2x256xi32> to vector<2x256xf32>
    %34 = arith.addf %26, %33 : vector<2x256xf32>
    %35 = vector.extract_strided_slice %0 {offsets = [0, 8], sizes = [2, 1], strides = [1, 1]} : vector<2x29xi32> to vector<2x1xi32>
    %c64_i32 = arith.constant 64 : i32
    %36 = vector.broadcast %c64_i32 : i32 to vector<2x1xi32>
    %37 = arith.addi %35, %36 : vector<2x1xi32>
    %38 = vector.broadcast %37 : vector<2x1xi32> to vector<2x256xi32>
    %39 = arith.cmpi eq, %1, %38 : vector<2x256xi32>
    %40 = arith.extui %39 : vector<2x256xi1> to vector<2x256xi32>
    %41 = arith.sitofp %40 : vector<2x256xi32> to vector<2x256xf32>
    %42 = arith.addf %34, %41 : vector<2x256xf32>
    %43 = vector.extract_strided_slice %0 {offsets = [0, 9], sizes = [2, 1], strides = [1, 1]} : vector<2x29xi32> to vector<2x1xi32>
    %c76_i32 = arith.constant 76 : i32
    %44 = vector.broadcast %c76_i32 : i32 to vector<2x1xi32>
    %45 = arith.addi %43, %44 : vector<2x1xi32>
    %46 = vector.broadcast %45 : vector<2x1xi32> to vector<2x256xi32>
    %47 = arith.cmpi eq, %1, %46 : vector<2x256xi32>
    %48 = arith.extui %47 : vector<2x256xi1> to vector<2x256xi32>
    %49 = arith.sitofp %48 : vector<2x256xi32> to vector<2x256xf32>
    %50 = arith.addf %42, %49 : vector<2x256xf32>
    %51 = vector.extract_strided_slice %0 {offsets = [0, 10], sizes = [2, 1], strides = [1, 1]} : vector<2x29xi32> to vector<2x1xi32>
    %c88_i32 = arith.constant 88 : i32
    %52 = vector.broadcast %c88_i32 : i32 to vector<2x1xi32>
    %53 = arith.addi %51, %52 : vector<2x1xi32>
    %54 = vector.broadcast %53 : vector<2x1xi32> to vector<2x256xi32>
    %55 = arith.cmpi eq, %1, %54 : vector<2x256xi32>
    %56 = arith.extui %55 : vector<2x256xi1> to vector<2x256xi32>
    %57 = arith.sitofp %56 : vector<2x256xi32> to vector<2x256xf32>
    %58 = arith.addf %50, %57 : vector<2x256xf32>
    %59 = vector.extract_strided_slice %0 {offsets = [0, 11], sizes = [2, 1], strides = [1, 1]} : vector<2x29xi32> to vector<2x1xi32>
    %c100_i32 = arith.constant 100 : i32
    %60 = vector.broadcast %c100_i32 : i32 to vector<2x1xi32>
    %61 = arith.addi %59, %60 : vector<2x1xi32>
    %62 = vector.broadcast %61 : vector<2x1xi32> to vector<2x256xi32>
    %63 = arith.cmpi eq, %1, %62 : vector<2x256xi32>
    %64 = arith.extui %63 : vector<2x256xi1> to vector<2x256xi32>
    %65 = arith.sitofp %64 : vector<2x256xi32> to vector<2x256xf32>
    %66 = arith.addf %58, %65 : vector<2x256xf32>
    %67 = vector.extract_strided_slice %0 {offsets = [0, 12], sizes = [2, 1], strides = [1, 1]} : vector<2x29xi32> to vector<2x1xi32>
    %c120_i32 = arith.constant 120 : i32
    %68 = vector.broadcast %c120_i32 : i32 to vector<2x1xi32>
    %69 = arith.addi %67, %68 : vector<2x1xi32>
    %70 = vector.broadcast %69 : vector<2x1xi32> to vector<2x256xi32>
    %71 = arith.cmpi eq, %1, %70 : vector<2x256xi32>
    %72 = arith.extui %71 : vector<2x256xi1> to vector<2x256xi32>
    %73 = arith.sitofp %72 : vector<2x256xi32> to vector<2x256xf32>
    %74 = arith.addf %66, %73 : vector<2x256xf32>
    %75 = vector.extract_strided_slice %0 {offsets = [0, 13], sizes = [2, 1], strides = [1, 1]} : vector<2x29xi32> to vector<2x1xi32>
    %c140_i32 = arith.constant 140 : i32
    %76 = vector.broadcast %c140_i32 : i32 to vector<2x1xi32>
    %77 = arith.addi %75, %76 : vector<2x1xi32>
    %78 = vector.broadcast %77 : vector<2x1xi32> to vector<2x256xi32>
    %79 = arith.cmpi eq, %1, %78 : vector<2x256xi32>
    %80 = arith.extui %79 : vector<2x256xi1> to vector<2x256xi32>
    %81 = arith.sitofp %80 : vector<2x256xi32> to vector<2x256xf32>
    %82 = arith.addf %74, %81 : vector<2x256xf32>
    %83 = vector.extract_strided_slice %0 {offsets = [0, 14], sizes = [2, 1], strides = [1, 1]} : vector<2x29xi32> to vector<2x1xi32>
    %c160_i32 = arith.constant 160 : i32
    %84 = vector.broadcast %c160_i32 : i32 to vector<2x1xi32>
    %85 = arith.addi %83, %84 : vector<2x1xi32>
    %86 = vector.broadcast %85 : vector<2x1xi32> to vector<2x256xi32>
    %87 = arith.cmpi eq, %1, %86 : vector<2x256xi32>
    %88 = arith.extui %87 : vector<2x256xi1> to vector<2x256xi32>
    %89 = arith.sitofp %88 : vector<2x256xi32> to vector<2x256xf32>
    %90 = arith.addf %82, %89 : vector<2x256xf32>
    %91 = vector.extract_strided_slice %0 {offsets = [0, 19], sizes = [2, 1], strides = [1, 1]} : vector<2x29xi32> to vector<2x1xi32>
    %c180_i32 = arith.constant 180 : i32
    %92 = vector.broadcast %c180_i32 : i32 to vector<2x1xi32>
    %93 = arith.addi %91, %92 : vector<2x1xi32>
    %94 = vector.broadcast %93 : vector<2x1xi32> to vector<2x256xi32>
    %95 = arith.cmpi eq, %1, %94 : vector<2x256xi32>
    %96 = arith.extui %95 : vector<2x256xi1> to vector<2x256xi32>
    %97 = arith.sitofp %96 : vector<2x256xi32> to vector<2x256xf32>
    %98 = arith.addf %90, %97 : vector<2x256xf32>
    %99 = vector.extract_strided_slice %0 {offsets = [0, 20], sizes = [2, 1], strides = [1, 1]} : vector<2x29xi32> to vector<2x1xi32>
    %c190_i32 = arith.constant 190 : i32
    %100 = vector.broadcast %c190_i32 : i32 to vector<2x1xi32>
    %101 = arith.addi %99, %100 : vector<2x1xi32>
    %102 = vector.broadcast %101 : vector<2x1xi32> to vector<2x256xi32>
    %103 = arith.cmpi eq, %1, %102 : vector<2x256xi32>
    %104 = arith.extui %103 : vector<2x256xi1> to vector<2x256xi32>
    %105 = arith.sitofp %104 : vector<2x256xi32> to vector<2x256xf32>
    %106 = arith.addf %98, %105 : vector<2x256xf32>
    %107 = vector.extract_strided_slice %0 {offsets = [0, 21], sizes = [2, 1], strides = [1, 1]} : vector<2x29xi32> to vector<2x1xi32>
    %c200_i32 = arith.constant 200 : i32
    %108 = vector.broadcast %c200_i32 : i32 to vector<2x1xi32>
    %109 = arith.addi %107, %108 : vector<2x1xi32>
    %110 = vector.broadcast %109 : vector<2x1xi32> to vector<2x256xi32>
    %111 = arith.cmpi eq, %1, %110 : vector<2x256xi32>
    %112 = arith.extui %111 : vector<2x256xi1> to vector<2x256xi32>
    %113 = arith.sitofp %112 : vector<2x256xi32> to vector<2x256xf32>
    %114 = arith.addf %106, %113 : vector<2x256xf32>
    %115 = vector.extract_strided_slice %0 {offsets = [0, 25], sizes = [2, 1], strides = [1, 1]} : vector<2x29xi32> to vector<2x1xi32>
    %c210_i32 = arith.constant 210 : i32
    %116 = vector.broadcast %c210_i32 : i32 to vector<2x1xi32>
    %117 = arith.addi %115, %116 : vector<2x1xi32>
    %118 = vector.broadcast %117 : vector<2x1xi32> to vector<2x256xi32>
    %119 = arith.cmpi eq, %1, %118 : vector<2x256xi32>
    %120 = arith.extui %119 : vector<2x256xi1> to vector<2x256xi32>
    %121 = arith.sitofp %120 : vector<2x256xi32> to vector<2x256xf32>
    %122 = arith.addf %114, %121 : vector<2x256xf32>
    %123 = vector.extract_strided_slice %0 {offsets = [0, 26], sizes = [2, 1], strides = [1, 1]} : vector<2x29xi32> to vector<2x1xi32>
    %c218_i32 = arith.constant 218 : i32
    %124 = vector.broadcast %c218_i32 : i32 to vector<2x1xi32>
    %125 = arith.addi %123, %124 : vector<2x1xi32>
    %126 = vector.broadcast %125 : vector<2x1xi32> to vector<2x256xi32>
    %127 = arith.cmpi eq, %1, %126 : vector<2x256xi32>
    %128 = arith.extui %127 : vector<2x256xi1> to vector<2x256xi32>
    %129 = arith.sitofp %128 : vector<2x256xi32> to vector<2x256xf32>
    %130 = arith.addf %122, %129 : vector<2x256xf32>
    %c0_1 = arith.constant 0 : index
    %c0_2 = arith.constant 0 : index
    %131 = vector.load %arg6[%c0_1, %c0_2] : memref<2x256xf32, #tpu.memory_space<vmem>>, vector<2x256xf32>
    tpu.vector_store %arg6[%c0_1, %c0_2], %130 {strides = array<i32>} : memref<2x256xf32, #tpu.memory_space<vmem>>, vector<2x256xf32>,
    %c0_3 = arith.constant 0 : index
    %c0_4 = arith.constant 0 : index
    %132 = vector.load %arg3[%c0_3, %c0_4] : memref<256x256xf32, #tpu.memory_space<vmem>>, vector<256x256xf32>
    %cst_5 = arith.constant dense<0.000000e+00> : vector<2x256xf32>
    %133 = tpu.matmul %130, %132, %cst_5 {dimension_numbers = #tpu.dot_dimension_numbers<[1], [0], [0], [1], [0, 0, 1, 1], [], []>} : vector<2x256xf32>, vector<256x256xf32>, vector<2x256xf32> -> vector<2x256xf32>
    %c0_6 = arith.constant 0 : index
    %c0_7 = arith.constant 0 : index
    %134 = vector.load %arg2[%c0_6, %c0_7] : memref<2x36xf32, #tpu.memory_space<vmem>>, vector<2x36xf32>
    %c0_8 = arith.constant 0 : index
    %c0_9 = arith.constant 0 : index
    %135 = vector.load %arg4[%c0_8, %c0_9] : memref<36x256xf32, #tpu.memory_space<vmem>>, vector<36x256xf32>
    %cst_10 = arith.constant dense<0.000000e+00> : vector<2x256xf32>
    %136 = tpu.matmul %134, %135, %cst_10 {dimension_numbers = #tpu.dot_dimension_numbers<[1], [0], [0], [1], [0, 0, 1, 1], [], []>} : vector<2x36xf32>, vector<36x256xf32>, vector<2x256xf32> -> vector<2x256xf32>
    %137 = arith.addf %133, %136 : vector<2x256xf32>
    %138 = vector.extract_strided_slice %0 {offsets = [0, 0], sizes = [2, 1], strides = [1, 1]} : vector<2x29xi32> to vector<2x1xi32>
    %c3_i32 = arith.constant 3 : i32
    %139 = vector.broadcast %c3_i32 : i32 to vector<2x1xi32>
    %140 = arith.addi %138, %139 : vector<2x1xi32>
    %141 = vector.broadcast %140 : vector<2x1xi32> to vector<2x256xi32>
    %142 = arith.cmpi eq, %1, %141 : vector<2x256xi32>
    %143 = arith.extui %142 : vector<2x256xi1> to vector<2x256xi32>
    %144 = arith.sitofp %143 : vector<2x256xi32> to vector<2x256xf32>
    %145 = arith.addf %137, %144 : vector<2x256xf32>
    %146 = vector.extract_strided_slice %0 {offsets = [0, 1], sizes = [2, 1], strides = [1, 1]} : vector<2x29xi32> to vector<2x1xi32>
    %c9_i32 = arith.constant 9 : i32
    %147 = vector.broadcast %c9_i32 : i32 to vector<2x1xi32>
    %148 = arith.addi %146, %147 : vector<2x1xi32>
    %149 = vector.broadcast %148 : vector<2x1xi32> to vector<2x256xi32>
    %150 = arith.cmpi eq, %1, %149 : vector<2x256xi32>
    %151 = arith.extui %150 : vector<2x256xi1> to vector<2x256xi32>
    %152 = arith.sitofp %151 : vector<2x256xi32> to vector<2x256xf32>
    %153 = arith.addf %145, %152 : vector<2x256xf32>
    %154 = vector.extract_strided_slice %0 {offsets = [0, 2], sizes = [2, 1], strides = [1, 1]} : vector<2x29xi32> to vector<2x1xi32>
    %c15_i32 = arith.constant 15 : i32
    %155 = vector.broadcast %c15_i32 : i32 to vector<2x1xi32>
    %156 = arith.addi %154, %155 : vector<2x1xi32>
    %157 = vector.broadcast %156 : vector<2x1xi32> to vector<2x256xi32>
    %158 = arith.cmpi eq, %1, %157 : vector<2x256xi32>
    %159 = arith.extui %158 : vector<2x256xi1> to vector<2x256xi32>
    %160 = arith.sitofp %159 : vector<2x256xi32> to vector<2x256xf32>
    %161 = arith.addf %153, %160 : vector<2x256xf32>
    %162 = vector.extract_strided_slice %0 {offsets = [0, 3], sizes = [2, 1], strides = [1, 1]} : vector<2x29xi32> to vector<2x1xi32>
    %c21_i32 = arith.constant 21 : i32
    %163 = vector.broadcast %c21_i32 : i32 to vector<2x1xi32>
    %164 = arith.addi %162, %163 : vector<2x1xi32>
    %165 = vector.broadcast %164 : vector<2x1xi32> to vector<2x256xi32>
    %166 = arith.cmpi eq, %1, %165 : vector<2x256xi32>
    %167 = arith.extui %166 : vector<2x256xi1> to vector<2x256xi32>
    %168 = arith.sitofp %167 : vector<2x256xi32> to vector<2x256xf32>
    %169 = arith.addf %161, %168 : vector<2x256xf32>
    %170 = vector.extract_strided_slice %0 {offsets = [0, 15], sizes = [2, 1], strides = [1, 1]} : vector<2x29xi32> to vector<2x1xi32>
    %c134_i32 = arith.constant 134 : i32
    %171 = vector.broadcast %c134_i32 : i32 to vector<2x1xi32>
    %172 = arith.addi %170, %171 : vector<2x1xi32>
    %173 = vector.broadcast %172 : vector<2x1xi32> to vector<2x256xi32>
    %174 = arith.cmpi eq, %1, %173 : vector<2x256xi32>
    %175 = arith.extui %174 : vector<2x256xi1> to vector<2x256xi32>
    %176 = arith.sitofp %175 : vector<2x256xi32> to vector<2x256xf32>
    %177 = arith.addf %169, %176 : vector<2x256xf32>
    %178 = vector.extract_strided_slice %0 {offsets = [0, 16], sizes = [2, 1], strides = [1, 1]} : vector<2x29xi32> to vector<2x1xi32>
    %c138_i32 = arith.constant 138 : i32
    %179 = vector.broadcast %c138_i32 : i32 to vector<2x1xi32>
    %180 = arith.addi %178, %179 : vector<2x1xi32>
    %181 = vector.broadcast %180 : vector<2x1xi32> to vector<2x256xi32>
    %182 = arith.cmpi eq, %1, %181 : vector<2x256xi32>
    %183 = arith.extui %182 : vector<2x256xi1> to vector<2x256xi32>
    %184 = arith.sitofp %183 : vector<2x256xi32> to vector<2x256xf32>
    %185 = arith.addf %177, %184 : vector<2x256xf32>
    %186 = vector.extract_strided_slice %0 {offsets = [0, 17], sizes = [2, 1], strides = [1, 1]} : vector<2x29xi32> to vector<2x1xi32>
    %c142_i32 = arith.constant 142 : i32
    %187 = vector.broadcast %c142_i32 : i32 to vector<2x1xi32>
    %188 = arith.addi %186, %187 : vector<2x1xi32>
    %189 = vector.broadcast %188 : vector<2x1xi32> to vector<2x256xi32>
    %190 = arith.cmpi eq, %1, %189 : vector<2x256xi32>
    %191 = arith.extui %190 : vector<2x256xi1> to vector<2x256xi32>
    %192 = arith.sitofp %191 : vector<2x256xi32> to vector<2x256xf32>
    %193 = arith.addf %185, %192 : vector<2x256xf32>
    %194 = vector.extract_strided_slice %0 {offsets = [0, 18], sizes = [2, 1], strides = [1, 1]} : vector<2x29xi32> to vector<2x1xi32>
    %c146_i32 = arith.constant 146 : i32
    %195 = vector.broadcast %c146_i32 : i32 to vector<2x1xi32>
    %196 = arith.addi %194, %195 : vector<2x1xi32>
    %197 = vector.broadcast %196 : vector<2x1xi32> to vector<2x256xi32>
    %198 = arith.cmpi eq, %1, %197 : vector<2x256xi32>
    %199 = arith.extui %198 : vector<2x256xi1> to vector<2x256xi32>
    %200 = arith.sitofp %199 : vector<2x256xi32> to vector<2x256xf32>
    %201 = arith.addf %193, %200 : vector<2x256xf32>
    %202 = vector.extract_strided_slice %0 {offsets = [0, 22], sizes = [2, 1], strides = [1, 1]} : vector<2x29xi32> to vector<2x1xi32>
    %c182_i32 = arith.constant 182 : i32
    %203 = vector.broadcast %c182_i32 : i32 to vector<2x1xi32>
    %204 = arith.addi %202, %203 : vector<2x1xi32>
    %205 = vector.broadcast %204 : vector<2x1xi32> to vector<2x256xi32>
    %206 = arith.cmpi eq, %1, %205 : vector<2x256xi32>
    %207 = arith.extui %206 : vector<2x256xi1> to vector<2x256xi32>
    %208 = arith.sitofp %207 : vector<2x256xi32> to vector<2x256xf32>
    %209 = arith.addf %201, %208 : vector<2x256xf32>
    %210 = vector.extract_strided_slice %0 {offsets = [0, 23], sizes = [2, 1], strides = [1, 1]} : vector<2x29xi32> to vector<2x1xi32>
    %c187_i32 = arith.constant 187 : i32
    %211 = vector.broadcast %c187_i32 : i32 to vector<2x1xi32>
    %212 = arith.addi %210, %211 : vector<2x1xi32>
    %213 = vector.broadcast %212 : vector<2x1xi32> to vector<2x256xi32>
    %214 = arith.cmpi eq, %1, %213 : vector<2x256xi32>
    %215 = arith.extui %214 : vector<2x256xi1> to vector<2x256xi32>
    %216 = arith.sitofp %215 : vector<2x256xi32> to vector<2x256xf32>
    %217 = arith.addf %209, %216 : vector<2x256xf32>
    %218 = vector.extract_strided_slice %0 {offsets = [0, 24], sizes = [2, 1], strides = [1, 1]} : vector<2x29xi32> to vector<2x1xi32>
    %c192_i32 = arith.constant 192 : i32
    %219 = vector.broadcast %c192_i32 : i32 to vector<2x1xi32>
    %220 = arith.addi %218, %219 : vector<2x1xi32>
    %221 = vector.broadcast %220 : vector<2x1xi32> to vector<2x256xi32>
    %222 = arith.cmpi eq, %1, %221 : vector<2x256xi32>
    %223 = arith.extui %222 : vector<2x256xi1> to vector<2x256xi32>
    %224 = arith.sitofp %223 : vector<2x256xi32> to vector<2x256xf32>
    %225 = arith.addf %217, %224 : vector<2x256xf32>
    %226 = vector.extract_strided_slice %0 {offsets = [0, 27], sizes = [2, 1], strides = [1, 1]} : vector<2x29xi32> to vector<2x1xi32>
    %c219_i32 = arith.constant 219 : i32
    %227 = vector.broadcast %c219_i32 : i32 to vector<2x1xi32>
    %228 = arith.addi %226, %227 : vector<2x1xi32>
    %229 = vector.broadcast %228 : vector<2x1xi32> to vector<2x256xi32>
    %230 = arith.cmpi eq, %1, %229 : vector<2x256xi32>
    %231 = arith.extui %230 : vector<2x256xi1> to vector<2x256xi32>
    %232 = arith.sitofp %231 : vector<2x256xi32> to vector<2x256xf32>
    %233 = arith.addf %225, %232 : vector<2x256xf32>
    %234 = vector.extract_strided_slice %0 {offsets = [0, 28], sizes = [2, 1], strides = [1, 1]} : vector<2x29xi32> to vector<2x1xi32>
    %c222_i32 = arith.constant 222 : i32
    %235 = vector.broadcast %c222_i32 : i32 to vector<2x1xi32>
    %236 = arith.addi %234, %235 : vector<2x1xi32>
    %237 = vector.broadcast %236 : vector<2x1xi32> to vector<2x256xi32>
    %238 = arith.cmpi eq, %1, %237 : vector<2x256xi32>
    %239 = arith.extui %238 : vector<2x256xi1> to vector<2x256xi32>
    %240 = arith.sitofp %239 : vector<2x256xi32> to vector<2x256xf32>
    %241 = arith.addf %233, %240 : vector<2x256xf32>
    %c0_11 = arith.constant 0 : index
    %c0_12 = arith.constant 0 : index
    %242 = vector.load %arg5[%c0_11, %c0_12] : memref<2x256xf32, #tpu.memory_space<vmem>>, vector<2x256xf32>
    tpu.vector_store %arg5[%c0_11, %c0_12], %241 {strides = array<i32>} : memref<2x256xf32, #tpu.memory_space<vmem>>, vector<2x256xf32>,
    return
  }
  func.func @transform_0(%arg0: i32) -> (i32, i32) {
    %c0_i32 = arith.constant 0 : i32
    %c0_i32_0 = arith.constant 0 : i32
    return %arg0, %c0_i32 : i32, i32
  }
  func.func @transform_1(%arg0: i32) -> (i32, i32) {
    %c0_i32 = arith.constant 0 : i32
    %c0_i32_0 = arith.constant 0 : i32
    return %arg0, %c0_i32 : i32, i32
  }
  func.func @transform_2(%arg0: i32) -> (i32, i32) {
    %c0_i32 = arith.constant 0 : i32
    %c0_i32_0 = arith.constant 0 : i32
    %c0_i32_1 = arith.constant 0 : i32
    return %c0_i32, %c0_i32_0 : i32, i32
  }
  func.func @transform_3(%arg0: i32) -> (i32, i32) {
    %c0_i32 = arith.constant 0 : i32
    %c0_i32_0 = arith.constant 0 : i32
    %c0_i32_1 = arith.constant 0 : i32
    return %c0_i32, %c0_i32_0 : i32, i32
  }
  func.func @transform_4(%arg0: i32) -> (i32, i32) {
    %c0_i32 = arith.constant 0 : i32
    %c0_i32_0 = arith.constant 0 : i32
    return %arg0, %c0_i32 : i32, i32
  }
  func.func @transform_5(%arg0: i32) -> (i32, i32) {
    %c0_i32 = arith.constant 0 : i32
    %c0_i32_0 = arith.constant 0 : i32
    return %arg0, %c0_i32 : i32, i32
  }
}

</mosaic_0001>

<llo_original>
// kernel: tpu_custom_call.1
$region0: #{tpu_custom_call.1}
  #allocation0 [shape = 'u32[]', space=smem, size = 0x4, offset = 0x4, fixed_abs, tag = 'smem constant byte address 0x4 - core index']
  #allocation1 [shape = 'u32[144,128]{1,0:T(1,128)}', space=vmem, size = 0x12000, scoped, tag = 'internal scratch']
  %s0 = inlined_call_operand.hbm [shape: s32[2,29], index: 0, kind: input, shape index: {}]
  %s1 = inlined_call_operand.hbm [shape: f32[2,36], index: 1, kind: input, shape index: {}]
  %s2 = inlined_call_operand.hbm [shape: f32[256,256], index: 2, kind: input, shape index: {}]
  %s3 = inlined_call_operand.hbm [shape: f32[36,256], index: 3, kind: input, shape index: {}]
  %s4 = inlined_call_operand.hbm [shape: f32[2,256], index: 4, kind: output, shape index: {0}]
  %s5 = inlined_call_operand.hbm [shape: f32[2,256], index: 5, kind: output, shape index: {1}]
  %6 = xla_tuple %s4, %s5
  %s7 = sld [smem:[#allocation0]]
  $region50: #{tpu_custom_call.1} parent=0
    _
  %s9 = ssub.s32 1, %s7
  %s10 = scalar_select 0, %s9, %s7
  $region1: #{tpu_custom_call.1} parent=0
    #allocation2 [shape = 'u8[1024]{0}', space=vmem, size = 0x400, scoped, tag = 'input window, operand 0, single buffered']
    #allocation3 [shape = 's32[1]{0}', space=sflag, size = 0x4, scoped, tag = 'scoped memory for tpu_custom_call.1']
    #allocation4 [shape = 's32[1]{0}', space=sflag, size = 0x4, scoped, tag = 'scoped memory for tpu_custom_call.1']
    #allocation5 [shape = 'u8[1024]{0}', space=vmem, size = 0x400, scoped, tag = 'input window, operand 1, single buffered']
    #allocation6 [shape = 's32[1]{0}', space=sflag, size = 0x4, scoped, tag = 'scoped memory for tpu_custom_call.1']
    #allocation7 [shape = 'u8[262144]{0}', space=vmem, size = 0x40000, scoped, tag = 'input window, operand 2, single buffered']
    #allocation8 [shape = 'u8[40960]{0}', space=vmem, size = 0xa000, scoped, tag = 'input window, operand 3, single buffered']
    #allocation9 [shape = 's32[1]{0}', space=sflag, size = 0x4, scoped, tag = 'scoped memory for tpu_custom_call.1']
    #allocation10 [shape = 'u8[2048]{0}', space=vmem, size = 0x800, scoped, tag = 'output window, operand 0, single buffered']
    #allocation11 [shape = 'u8[2048]{0}', space=vmem, size = 0x800, scoped, tag = 'output window, operand 1, single buffered']
    #allocation12 [shape = 's32[1]{0}', space=sflag, size = 0x4, scoped, tag = 'scoped memory for tpu_custom_call.1']
    %11 = vsyncpa [#allocation3], 0
    %12 = vsyncpa [#allocation6], 0
    %13 = vsyncpa [#allocation9], 0
    %14 = vsyncpa [#allocation4], 0
    %15 = vsyncpa [#allocation12], 0
    // Predicated region
    $region2: #{tpu_custom_call.1} parent=1 // pred_check
      _
    $region3: #{tpu_custom_call.1} parent=1 // pred_check_branch
      %17 = sbr.rel (0) target = $region5
    $region4: #{tpu_custom_call.1} parent=1 // pred_region
      %s19 = ssub.s32 32, 32
      %20 = vsyncadd [#allocation3], %s19
      %s22 = sshll.u32 [#allocation2], 4
      %s23 = int_to_ptr.vmem [resolvable:$true] %s22
      %25 = dma.hbm_to_vmem [thread:$0]  %s0, 32, %s23, [#allocation3]
    $region5: #{tpu_custom_call.1} parent=1 // pred_fallthru
      _
    // Predicated region
    $region6: #{tpu_custom_call.1} parent=1 // pred_check
      _
    $region7: #{tpu_custom_call.1} parent=1 // pred_check_branch
      %27 = sbr.rel (0) target = $region9
    $region8: #{tpu_custom_call.1} parent=1 // pred_region
      %s29 = ssub.s32 32, 32
      %30 = vsyncadd [#allocation6], %s29
      %s32 = sshll.u32 [#allocation5], 4
      %s33 = int_to_ptr.vmem [resolvable:$true] %s32
      %35 = dma.hbm_to_vmem [thread:$0]  %s1, 32, %s33, [#allocation6]
    $region9: #{tpu_custom_call.1} parent=1 // pred_fallthru
      _
    // Predicated region
    $region10: #{tpu_custom_call.1} parent=1 // pred_check
      _
    $region11: #{tpu_custom_call.1} parent=1 // pred_check_branch
      %37 = sbr.rel (0) target = $region13
    $region12: #{tpu_custom_call.1} parent=1 // pred_region
      %s39 = ssub.s32 8192, 8192
      %40 = vsyncadd [#allocation6], %s39
      %s41 = sshll.u32 [#allocation7], 4
      %s42 = int_to_ptr.vmem [resolvable:$true] %s41
      %47 = dma.hbm_to_vmem [thread:$0]  %s2, 8192, %s42, [#allocation6], 256, 256, 16
    $region13: #{tpu_custom_call.1} parent=1 // pred_fallthru
      _
    // Predicated region
    $region14: #{tpu_custom_call.1} parent=1 // pred_check
      _
    $region15: #{tpu_custom_call.1} parent=1 // pred_check_branch
      %49 = sbr.rel (0) target = $region17
    $region16: #{tpu_custom_call.1} parent=1 // pred_region
      %s51 = ssub.s32 1280, 1280
      %52 = vsyncadd [#allocation9], %s51
      %s53 = sshll.u32 [#allocation8], 4
      %s54 = int_to_ptr.vmem [resolvable:$true] %s53
      %59 = dma.hbm_to_vmem [thread:$0]  %s3, 1280, %s54, [#allocation9], 256, 256, 16
    $region17: #{tpu_custom_call.1} parent=1 // pred_fallthru
      _
    // Predicated region
    $region18: #{tpu_custom_call.1} parent=1 // pred_check
      _
    $region19: #{tpu_custom_call.1} parent=1 // pred_check_branch
      %61 = sbr.rel (0) target = $region21
    $region20: #{tpu_custom_call.1} parent=1 // pred_region
      %62 = dma.done [#allocation3], 32
    $region21: #{tpu_custom_call.1} parent=1 // pred_fallthru
      _
    // Predicated region
    $region22: #{tpu_custom_call.1} parent=1 // pred_check
      _
    $region23: #{tpu_custom_call.1} parent=1 // pred_check_branch
      %64 = sbr.rel (0) target = $region25
    $region24: #{tpu_custom_call.1} parent=1 // pred_region
      %65 = dma.done [#allocation6], 32
    $region25: #{tpu_custom_call.1} parent=1 // pred_fallthru
      _
    // Predicated region
    $region26: #{tpu_custom_call.1} parent=1 // pred_check
      _
    $region27: #{tpu_custom_call.1} parent=1 // pred_check_branch
      %67 = sbr.rel (0) target = $region29
    $region28: #{tpu_custom_call.1} parent=1 // pred_region
      %68 = dma.done [#allocation6], 8192
    $region29: #{tpu_custom_call.1} parent=1 // pred_fallthru
      _
    // Predicated region
    $region30: #{tpu_custom_call.1} parent=1 // pred_check
      _
    $region31: #{tpu_custom_call.1} parent=1 // pred_check_branch
      %70 = sbr.rel (0) target = $region33
    $region32: #{tpu_custom_call.1} parent=1 // pred_region
      %71 = dma.done [#allocation9], 1280
    $region33: #{tpu_custom_call.1} parent=1 // pred_fallthru
      _
    %v72 = vld [vmem:[#allocation2] sm:$0x3]
    %v73 = vlaneseq
    %v74 = vand.u32 %v73, 127
    %v75 = vadd.s32 %v74, 128
    %76 = vset.pattern.permute.xlu0 4
    %77 = vperm.xlu0 %76, %v72
    %v78 = vpop.permute.xlu0 %77
    %vm79 = vcmp.eq.s32.totalorder %v74, %v78
    %vm80 = vcmp.eq.s32.totalorder %v75, %v78
    %v81 = vsel %vm79, 1, 0
    %v82 = vsel %vm80, 1, 0
    %v83 = vcvt.s32.f32 %v81
    %v84 = vcvt.s32.f32 %v82
    %v85 = vadd.f32 %v83, 0.0
    %v86 = vadd.f32 %v84, 0.0
    %v87 = vadd.s32 %v72, 16
    %88 = vset.pattern.permute.xlu0 5
    %89 = vperm.xlu0 %88, %v87
    %v90 = vpop.permute.xlu0 %89
    %vm91 = vcmp.eq.s32.totalorder %v74, %v90
    %vm92 = vcmp.eq.s32.totalorder %v75, %v90
    %v93 = vsel %vm91, 1, 0
    %v94 = vsel %vm92, 1, 0
    %v95 = vcvt.s32.f32 %v93
    %v96 = vcvt.s32.f32 %v94
    %v97 = vadd.f32 %v85, %v95
    %v98 = vadd.f32 %v86, %v96
    %v99 = vadd.s32 %v72, 32
    %100 = vset.pattern.permute.xlu0 6
    %101 = vperm.xlu0 %100, %v99
    %v102 = vpop.permute.xlu0 %101
    %vm103 = vcmp.eq.s32.totalorder %v74, %v102
    %vm104 = vcmp.eq.s32.totalorder %v75, %v102
    %v105 = vsel %vm103, 1, 0
    %v106 = vsel %vm104, 1, 0
    %v107 = vcvt.s32.f32 %v105
    %v108 = vcvt.s32.f32 %v106
    %v109 = vadd.f32 %v97, %v107
    %v110 = vadd.f32 %v98, %v108
    %v111 = vadd.s32 %v72, 48
    %112 = vset.pattern.permute.xlu0 7
    %113 = vperm.xlu0 %112, %v111
    %v114 = vpop.permute.xlu0 %113
    %vm115 = vcmp.eq.s32.totalorder %v74, %v114
    %vm116 = vcmp.eq.s32.totalorder %v75, %v114
    %v117 = vsel %vm115, 1, 0
    %v118 = vsel %vm116, 1, 0
    %v119 = vcvt.s32.f32 %v117
    %v120 = vcvt.s32.f32 %v118
    %v121 = vadd.f32 %v109, %v119
    %v122 = vadd.f32 %v110, %v120
    %v123 = vadd.s32 %v72, 64
    %124 = vset.pattern.permute.xlu0 8
    %125 = vperm.xlu0 %124, %v123
    %v126 = vpop.permute.xlu0 %125
    %vm127 = vcmp.eq.s32.totalorder %v74, %v126
    %vm128 = vcmp.eq.s32.totalorder %v75, %v126
    %v129 = vsel %vm127, 1, 0
    %v130 = vsel %vm128, 1, 0
    %v131 = vcvt.s32.f32 %v129
    %v132 = vcvt.s32.f32 %v130
    %v133 = vadd.f32 %v121, %v131
    %v134 = vadd.f32 %v122, %v132
    %v135 = vadd.s32 %v72, 76
    %136 = vset.pattern.permute.xlu0 9
    %137 = vperm.xlu0 %136, %v135
    %v138 = vpop.permute.xlu0 %137
    %vm139 = vcmp.eq.s32.totalorder %v74, %v138
    %vm140 = vcmp.eq.s32.totalorder %v75, %v138
    %v141 = vsel %vm139, 1, 0
    %v142 = vsel %vm140, 1, 0
    %v143 = vcvt.s32.f32 %v141
    %v144 = vcvt.s32.f32 %v142
    %v145 = vadd.f32 %v133, %v143
    %v146 = vadd.f32 %v134, %v144
    %v147 = vadd.s32 %v72, 88
    %148 = vset.pattern.permute.xlu0 10
    %149 = vperm.xlu0 %148, %v147
    %v150 = vpop.permute.xlu0 %149
    %vm151 = vcmp.eq.s32.totalorder %v74, %v150
    %vm152 = vcmp.eq.s32.totalorder %v75, %v150
    %v153 = vsel %vm151, 1, 0
    %v154 = vsel %vm152, 1, 0
    %v155 = vcvt.s32.f32 %v153
    %v156 = vcvt.s32.f32 %v154
    %v157 = vadd.f32 %v145, %v155
    %v158 = vadd.f32 %v146, %v156
    %v159 = vadd.s32 %v72, 100
    %160 = vset.pattern.permute.xlu0 11
    %161 = vperm.xlu0 %160, %v159
    %v162 = vpop.permute.xlu0 %161
    %vm163 = vcmp.eq.s32.totalorder %v74, %v162
    %vm164 = vcmp.eq.s32.totalorder %v75, %v162
    %v165 = vsel %vm163, 1, 0
    %v166 = vsel %vm164, 1, 0
    %v167 = vcvt.s32.f32 %v165
    %v168 = vcvt.s32.f32 %v166
    %v169 = vadd.f32 %v157, %v167
    %v170 = vadd.f32 %v158, %v168
    %v171 = vadd.s32 %v72, 120
    %172 = vset.pattern.permute.xlu0 12
    %173 = vperm.xlu0 %172, %v171
    %v174 = vpop.permute.xlu0 %173
    %vm175 = vcmp.eq.s32.totalorder %v74, %v174
    %vm176 = vcmp.eq.s32.totalorder %v75, %v174
    %v177 = vsel %vm175, 1, 0
    %v178 = vsel %vm176, 1, 0
    %v179 = vcvt.s32.f32 %v177
    %v180 = vcvt.s32.f32 %v178
    %v181 = vadd.f32 %v169, %v179
    %v182 = vadd.f32 %v170, %v180
    %v183 = vadd.s32 %v72, 140
    %184 = vset.pattern.permute.xlu0 13
    %185 = vperm.xlu0 %184, %v183
    %v186 = vpop.permute.xlu0 %185
    %vm187 = vcmp.eq.s32.totalorder %v74, %v186
    %vm188 = vcmp.eq.s32.totalorder %v75, %v186
    %v189 = vsel %vm187, 1, 0
    %v190 = vsel %vm188, 1, 0
    %v191 = vcvt.s32.f32 %v189
    %v192 = vcvt.s32.f32 %v190
    %v193 = vadd.f32 %v181, %v191
    %v194 = vadd.f32 %v182, %v192
    %v195 = vadd.s32 %v72, 160
    %196 = vset.pattern.permute.xlu0 14
    %197 = vperm.xlu0 %196, %v195
    %v198 = vpop.permute.xlu0 %197
    %vm199 = vcmp.eq.s32.totalorder %v74, %v198
    %vm200 = vcmp.eq.s32.totalorder %v75, %v198
    %v201 = vsel %vm199, 1, 0
    %v202 = vsel %vm200, 1, 0
    %v203 = vcvt.s32.f32 %v201
    %v204 = vcvt.s32.f32 %v202
    %v205 = vadd.f32 %v193, %v203
    %v206 = vadd.f32 %v194, %v204
    %v207 = vadd.s32 %v72, 180
    %208 = vset.pattern.permute.xlu0 19
    %209 = vperm.xlu0 %208, %v207
    %v210 = vpop.permute.xlu0 %209
    %vm211 = vcmp.eq.s32.totalorder %v74, %v210
    %vm212 = vcmp.eq.s32.totalorder %v75, %v210
    %v213 = vsel %vm211, 1, 0
    %v214 = vsel %vm212, 1, 0
    %v215 = vcvt.s32.f32 %v213
    %v216 = vcvt.s32.f32 %v214
    %v217 = vadd.f32 %v205, %v215
    %v218 = vadd.f32 %v206, %v216
    %v219 = vadd.s32 %v72, 190
    %220 = vset.pattern.permute.xlu0 20
    %221 = vperm.xlu0 %220, %v219
    %v222 = vpop.permute.xlu0 %221
    %vm223 = vcmp.eq.s32.totalorder %v74, %v222
    %vm224 = vcmp.eq.s32.totalorder %v75, %v222
    %v225 = vsel %vm223, 1, 0
    %v226 = vsel %vm224, 1, 0
    %v227 = vcvt.s32.f32 %v225
    %v228 = vcvt.s32.f32 %v226
    %v229 = vadd.f32 %v217, %v227
    %v230 = vadd.f32 %v218, %v228
    %v231 = vadd.s32 %v72, 200
    %232 = vset.pattern.permute.xlu0 21
    %233 = vperm.xlu0 %232, %v231
    %v234 = vpop.permute.xlu0 %233
    %vm235 = vcmp.eq.s32.totalorder %v74, %v234
    %vm236 = vcmp.eq.s32.totalorder %v75, %v234
    %v237 = vsel %vm235, 1, 0
    %v238 = vsel %vm236, 1, 0
    %v239 = vcvt.s32.f32 %v237
    %v240 = vcvt.s32.f32 %v238
    %v241 = vadd.f32 %v229, %v239
    %v242 = vadd.f32 %v230, %v240
    %v243 = vadd.s32 %v72, 210
    %244 = vset.pattern.permute.xlu0 25
    %245 = vperm.xlu0 %244, %v243
    %v246 = vpop.permute.xlu0 %245
    %vm247 = vcmp.eq.s32.totalorder %v74, %v246
    %vm248 = vcmp.eq.s32.totalorder %v75, %v246
    %v249 = vsel %vm247, 1, 0
    %v250 = vsel %vm248, 1, 0
    %v251 = vcvt.s32.f32 %v249
    %v252 = vcvt.s32.f32 %v250
    %v253 = vadd.f32 %v241, %v251
    %v254 = vadd.f32 %v242, %v252
    %v255 = vadd.s32 %v72, 218
    %256 = vset.pattern.permute.xlu0 26
    %257 = vperm.xlu0 %256, %v255
    %v258 = vpop.permute.xlu0 %257
    %vm259 = vcmp.eq.s32.totalorder %v74, %v258
    %vm260 = vcmp.eq.s32.totalorder %v75, %v258
    %v261 = vsel %vm259, 1, 0
    %v262 = vsel %vm260, 1, 0
    %v263 = vcvt.s32.f32 %v261
    %v264 = vcvt.s32.f32 %v262
    %v265 = vadd.f32 %v253, %v263
    %v266 = vadd.f32 %v254, %v264
    %v269 = vcombine.low %v265, %v266
    %v271 = vunpack.c.l.s4 1983009808
    %v272 = vunpack.c.0.s8 %v271
    %v273 = vlaneseq
    %v274 = vshrl.u32 %v273, 7
    %v275 = vsub.s32 %v272, %v274
    %v276 = vrot.slane %v269, %v275
    %278 = vst [vmem:[#allocation11] sm:$0xf] %v276
    %v279 = vld [vmem:[#allocation7] sm:$0xff]
    %v280 = vld [vmem:[#allocation7 + $0x8] sm:$0xff]
    %v281 = vld [vmem:[#allocation7 + $0x10] sm:$0xff]
    %v282 = vld [vmem:[#allocation7 + $0x18] sm:$0xff]
    %v283 = vld [vmem:[#allocation7 + $0x20] sm:$0xff]
    %v284 = vld [vmem:[#allocation7 + $0x28] sm:$0xff]
    %v285 = vld [vmem:[#allocation7 + $0x30] sm:$0xff]
    %v286 = vld [vmem:[#allocation7 + $0x38] sm:$0xff]
    %v287 = vld [vmem:[#allocation7 + $0x40] sm:$0xff]
    %v288 = vld [vmem:[#allocation7 + $0x48] sm:$0xff]
    %v289 = vld [vmem:[#allocation7 + $0x50] sm:$0xff]
    %v290 = vld [vmem:[#allocation7 + $0x58] sm:$0xff]
    %v291 = vld [vmem:[#allocation7 + $0x60] sm:$0xff]
    %v292 = vld [vmem:[#allocation7 + $0x68] sm:$0xff]
    %v293 = vld [vmem:[#allocation7 + $0x70] sm:$0xff]
    %v294 = vld [vmem:[#allocation7 + $0x78] sm:$0xff]
    %v295 = vld [vmem:[#allocation7 + $0x80] sm:$0xff]
    %v296 = vld [vmem:[#allocation7 + $0x88] sm:$0xff]
    %v297 = vld [vmem:[#allocation7 + $0x90] sm:$0xff]
    %v298 = vld [vmem:[#allocation7 + $0x98] sm:$0xff]
    %v299 = vld [vmem:[#allocation7 + $0xa0] sm:$0xff]
    %v300 = vld [vmem:[#allocation7 + $0xa8] sm:$0xff]
    %v301 = vld [vmem:[#allocation7 + $0xb0] sm:$0xff]
    %v302 = vld [vmem:[#allocation7 + $0xb8] sm:$0xff]
    %v303 = vld [vmem:[#allocation7 + $0xc0] sm:$0xff]
    %v304 = vld [vmem:[#allocation7 + $0xc8] sm:$0xff]
    %v305 = vld [vmem:[#allocation7 + $0xd0] sm:$0xff]
    %v306 = vld [vmem:[#allocation7 + $0xd8] sm:$0xff]
    %v307 = vld [vmem:[#allocation7 + $0xe0] sm:$0xff]
    %v308 = vld [vmem:[#allocation7 + $0xe8] sm:$0xff]
    %v309 = vld [vmem:[#allocation7 + $0xf0] sm:$0xff]
    %v310 = vld [vmem:[#allocation7 + $0xf8] sm:$0xff]
    %v311 = vld [vmem:[#allocation7 + $0x100] sm:$0xff]
    %v312 = vld [vmem:[#allocation7 + $0x108] sm:$0xff]
    %v313 = vld [vmem:[#allocation7 + $0x110] sm:$0xff]
    %v314 = vld [vmem:[#allocation7 + $0x118] sm:$0xff]
    %v315 = vld [vmem:[#allocation7 + $0x120] sm:$0xff]
    %v316 = vld [vmem:[#allocation7 + $0x128] sm:$0xff]
    %v317 = vld [vmem:[#allocation7 + $0x130] sm:$0xff]
    %v318 = vld [vmem:[#allocation7 + $0x138] sm:$0xff]
    %v319 = vld [vmem:[#allocation7 + $0x140] sm:$0xff]
    %v320 = vld [vmem:[#allocation7 + $0x148] sm:$0xff]
    %v321 = vld [vmem:[#allocation7 + $0x150] sm:$0xff]
    %v322 = vld [vmem:[#allocation7 + $0x158] sm:$0xff]
    %v323 = vld [vmem:[#allocation7 + $0x160] sm:$0xff]
    %v324 = vld [vmem:[#allocation7 + $0x168] sm:$0xff]
    %v325 = vld [vmem:[#allocation7 + $0x170] sm:$0xff]
    %v326 = vld [vmem:[#allocation7 + $0x178] sm:$0xff]
    %v327 = vld [vmem:[#allocation7 + $0x180] sm:$0xff]
    %v328 = vld [vmem:[#allocation7 + $0x188] sm:$0xff]
    %v329 = vld [vmem:[#allocation7 + $0x190] sm:$0xff]
    %v330 = vld [vmem:[#allocation7 + $0x198] sm:$0xff]
    %v331 = vld [vmem:[#allocation7 + $0x1a0] sm:$0xff]
    %v332 = vld [vmem:[#allocation7 + $0x1a8] sm:$0xff]
    %v333 = vld [vmem:[#allocation7 + $0x1b0] sm:$0xff]
    %v334 = vld [vmem:[#allocation7 + $0x1b8] sm:$0xff]
    %v335 = vld [vmem:[#allocation7 + $0x1c0] sm:$0xff]
    %v336 = vld [vmem:[#allocation7 + $0x1c8] sm:$0xff]
    %v337 = vld [vmem:[#allocation7 + $0x1d0] sm:$0xff]
    %v338 = vld [vmem:[#allocation7 + $0x1d8] sm:$0xff]
    %v339 = vld [vmem:[#allocation7 + $0x1e0] sm:$0xff]
    %v340 = vld [vmem:[#allocation7 + $0x1e8] sm:$0xff]
    %v341 = vld [vmem:[#allocation7 + $0x1f0] sm:$0xff]
    %v342 = vld [vmem:[#allocation7 + $0x1f8] sm:$0xff]
    %v343 = vld [vmem:[#allocation5] sm:$0x3]
    %v344 = vld [vmem:[#allocation8] sm:$0xff]
    %v345 = vld [vmem:[#allocation8 + $0x8] sm:$0xff]
    %v346 = vld [vmem:[#allocation8 + $0x10] sm:$0xff]
    %v347 = vld [vmem:[#allocation8 + $0x18] sm:$0xff]
    %v348 = vld [vmem:[#allocation8 + $0x20] sm:$0xff]
    %v349 = vld [vmem:[#allocation8 + $0x28] sm:$0xff]
    %v350 = vld [vmem:[#allocation8 + $0x30] sm:$0xff]
    %v351 = vld [vmem:[#allocation8 + $0x38] sm:$0xff]
    %v352 = vld [vmem:[#allocation8 + $0x40] sm:$0xf]
    %v353 = vld [vmem:[#allocation8 + $0x48] sm:$0xf]
    %vm354 = vcmask 293888
    %v356 = vsel %vm354, %v343, 0
    %vm358 = vcmask 1043456
    %v360 = vsel %vm358, %v352, 0
    %v363 = vsel %vm358, %v353, 0
    %365 = vmatprep.subr.mxu0 0.0
    %366 = vmatpush1.msra.mxu0 0.0
    %367 = vmatprep.subr.mxu0 0.0
    %368 = vmatpush1.msra.mxu0 0.0
    %369 = vmatprep.subr.mxu0 0.0
    %370 = vmatpush1.msra.mxu0 0.0
    %371 = vmatprep.subr.mxu0 0.0
    %372 = vmatpush1.msra.mxu0 0.0
    %373 = vmatprep.subr.mxu0 0.0
    %374 = vmatpush1.msra.mxu0 0.0
    %375 = vmatprep.subr.mxu0 0.0
    %376 = vmatpush1.msra.mxu0 0.0
    %377 = vmatprep.subr.mxu0 0.0
    %378 = vmatpush1.msra.mxu0 0.0
    %379 = vmatprep.subr.mxu0 0.0
    %380 = vmatpush1.msra.mxu0 0.0
    %381 = vmatprep.subr.mxu0 0.0
    %382 = vmatpush1.msra.mxu0 0.0
    %383 = vmatprep.subr.mxu0 0.0
    %384 = vmatpush1.msra.mxu0 0.0
    %385 = vmatprep.subr.mxu0 0.0
    %386 = vmatpush1.msra.mxu0 0.0
    %387 = vmatprep.subr.mxu0 %v363
    %388 = vmatpush1.msra.mxu0 %v360
    %389 = vmatprep.subr.mxu0 %v351
    %390 = vmatpush1.msra.mxu0 %v350
    %391 = vmatprep.subr.mxu0 %v349
    %392 = vmatpush1.msra.mxu0 %v348
    %393 = vmatprep.subr.mxu0 %v347
    %394 = vmatpush1.msra.mxu0 %v346
    %395 = vmatprep.subr.mxu0 %v345
    %396 = vmatpush1.msra.mxu0 %v344
    %397 = vmatprep.subr.mxu0 0.0
    %398 = vmatpush2.msra.mxu0 0.0
    %399 = vmatprep.subr.mxu0 0.0
    %400 = vmatpush2.msra.mxu0 0.0
    %401 = vmatprep.subr.mxu0 0.0
    %402 = vmatpush2.msra.mxu0 0.0
    %403 = vmatprep.subr.mxu0 0.0
    %404 = vmatpush2.msra.mxu0 0.0
    %405 = vmatprep.subr.mxu0 0.0
    %406 = vmatpush2.msra.mxu0 0.0
    %407 = vmatprep.subr.mxu0 0.0
    %408 = vmatpush2.msra.mxu0 0.0
    %409 = vmatprep.subr.mxu0 0.0
    %410 = vmatpush2.msra.mxu0 0.0
    %411 = vmatprep.subr.mxu0 0.0
    %412 = vmatpush2.msra.mxu0 0.0
    %413 = vmatprep.subr.mxu0 0.0
    %414 = vmatpush2.msra.mxu0 0.0
    %415 = vmatprep.subr.mxu0 0.0
    %416 = vmatpush2.msra.mxu0 0.0
    %417 = vmatprep.subr.mxu0 0.0
    %418 = vmatpush2.msra.mxu0 0.0
    %419 = vmatprep.subr.mxu0 0.0
    %420 = vmatpush2.msra.mxu0 0.0
    %421 = vmatprep.subr.mxu0 0.0
    %422 = vmatpush2.msra.mxu0 0.0
    %423 = vmatprep.subr.mxu0 0.0
    %424 = vmatpush2.msra.mxu0 0.0
    %425 = vmatprep.subr.mxu0 0.0
    %426 = vmatpush2.msra.mxu0 0.0
    %427 = vmatprep.subr.mxu0 0.0
    %428 = vmatpush2.msra.mxu0 0.0
    %429 = vmatprep.mubr.f32.mxu0 0.0
    %430 = vmatmul.mubr.f32.gmra.mxu0 %v356
    %v431 = vpop.f32.mrf.mxu0
    %v432 = vadd.f32 0.0, %v431
    %v433 = vpop.f32.mrf.mxu0
    %v434 = vadd.f32 0.0, %v433
    %435 = vdwg.mxu0
    %436 = vmatprep.subr.mxu0 %v310
    %437 = vmatpush1.msra.mxu0 %v309
    %438 = vmatprep.subr.mxu0 %v308
    %439 = vmatpush1.msra.mxu0 %v307
    %440 = vmatprep.subr.mxu0 %v306
    %441 = vmatpush1.msra.mxu0 %v305
    %442 = vmatprep.subr.mxu0 %v304
    %443 = vmatpush1.msra.mxu0 %v303
    %444 = vmatprep.subr.mxu0 %v302
    %445 = vmatpush1.msra.mxu0 %v301
    %446 = vmatprep.subr.mxu0 %v300
    %447 = vmatpush1.msra.mxu0 %v299
    %448 = vmatprep.subr.mxu0 %v298
    %449 = vmatpush1.msra.mxu0 %v297
    %450 = vmatprep.subr.mxu0 %v296
    %451 = vmatpush1.msra.mxu0 %v295
    %452 = vmatprep.subr.mxu0 %v294
    %453 = vmatpush1.msra.mxu0 %v293
    %454 = vmatprep.subr.mxu0 %v292
    %455 = vmatpush1.msra.mxu0 %v291
    %456 = vmatprep.subr.mxu0 %v290
    %457 = vmatpush1.msra.mxu0 %v289
    %458 = vmatprep.subr.mxu0 %v288
    %459 = vmatpush1.msra.mxu0 %v287
    %460 = vmatprep.subr.mxu0 %v286
    %461 = vmatpush1.msra.mxu0 %v285
    %462 = vmatprep.subr.mxu0 %v284
    %463 = vmatpush1.msra.mxu0 %v283
    %464 = vmatprep.subr.mxu0 %v282
    %465 = vmatpush1.msra.mxu0 %v281
    %466 = vmatprep.subr.mxu0 %v280
    %467 = vmatpush1.msra.mxu0 %v279
    %468 = vmatprep.subr.mxu0 %v342
    %469 = vmatpush2.msra.mxu0 %v341
    %470 = vmatprep.subr.mxu0 %v340
    %471 = vmatpush2.msra.mxu0 %v339
    %472 = vmatprep.subr.mxu0 %v338
    %473 = vmatpush2.msra.mxu0 %v337
    %474 = vmatprep.subr.mxu0 %v336
    %475 = vmatpush2.msra.mxu0 %v335
    %476 = vmatprep.subr.mxu0 %v334
    %477 = vmatpush2.msra.mxu0 %v333
    %478 = vmatprep.subr.mxu0 %v332
    %479 = vmatpush2.msra.mxu0 %v331
    %480 = vmatprep.subr.mxu0 %v330
    %481 = vmatpush2.msra.mxu0 %v329
    %482 = vmatprep.subr.mxu0 %v328
    %483 = vmatpush2.msra.mxu0 %v327
    %484 = vmatprep.subr.mxu0 %v326
    %485 = vmatpush2.msra.mxu0 %v325
    %486 = vmatprep.subr.mxu0 %v324
    %487 = vmatpush2.msra.mxu0 %v323
    %488 = vmatprep.subr.mxu0 %v322
    %489 = vmatpush2.msra.mxu0 %v321
    %490 = vmatprep.subr.mxu0 %v320
    %491 = vmatpush2.msra.mxu0 %v319
    %492 = vmatprep.subr.mxu0 %v318
    %493 = vmatpush2.msra.mxu0 %v317
    %494 = vmatprep.subr.mxu0 %v316
    %495 = vmatpush2.msra.mxu0 %v315
    %496 = vmatprep.subr.mxu0 %v314
    %497 = vmatpush2.msra.mxu0 %v313
    %498 = vmatprep.subr.mxu0 %v312
    %499 = vmatpush2.msra.mxu0 %v311
    %500 = vmatprep.mubr.f32.mxu0 %v266
    %501 = vmatmul.mubr.f32.gmra.mxu0 %v265
    %v502 = vpop.f32.mrf.mxu0
    %v503 = vadd.f32 %v432, %v502
    %v504 = vpop.f32.mrf.mxu0
    %v505 = vadd.f32 %v434, %v504
    %506 = vdwg.mxu0
    %v507 = vadd.s32 %v72, 3
    %508 = vset.pattern.permute.xlu0 0
    %509 = vperm.xlu0 %508, %v507
    %v510 = vpop.permute.xlu0 %509
    %vm511 = vcmp.eq.s32.totalorder %v74, %v510
    %vm512 = vcmp.eq.s32.totalorder %v75, %v510
    %v513 = vsel %vm511, 1, 0
    %v514 = vsel %vm512, 1, 0
    %v515 = vcvt.s32.f32 %v513
    %v516 = vcvt.s32.f32 %v514
    %v517 = vadd.f32 %v503, %v515
    %v518 = vadd.f32 %v505, %v516
    %v519 = vadd.s32 %v72, 9
    %520 = vset.pattern.permute.xlu0 1
    %521 = vperm.xlu0 %520, %v519
    %v522 = vpop.permute.xlu0 %521
    %vm523 = vcmp.eq.s32.totalorder %v74, %v522
    %vm524 = vcmp.eq.s32.totalorder %v75, %v522
    %v525 = vsel %vm523, 1, 0
    %v526 = vsel %vm524, 1, 0
    %v527 = vcvt.s32.f32 %v525
    %v528 = vcvt.s32.f32 %v526
    %v529 = vadd.f32 %v517, %v527
    %v530 = vadd.f32 %v518, %v528
    %v531 = vadd.s32 %v72, 15
    %532 = vset.pattern.permute.xlu0 2
    %533 = vperm.xlu0 %532, %v531
    %v534 = vpop.permute.xlu0 %533
    %vm535 = vcmp.eq.s32.totalorder %v74, %v534
    %vm536 = vcmp.eq.s32.totalorder %v75, %v534
    %v537 = vsel %vm535, 1, 0
    %v538 = vsel %vm536, 1, 0
    %v539 = vcvt.s32.f32 %v537
    %v540 = vcvt.s32.f32 %v538
    %v541 = vadd.f32 %v529, %v539
    %v542 = vadd.f32 %v530, %v540
    %v543 = vadd.s32 %v72, 21
    %544 = vset.pattern.permute.xlu0 3
    %545 = vperm.xlu0 %544, %v543
    %v546 = vpop.permute.xlu0 %545
    %vm547 = vcmp.eq.s32.totalorder %v74, %v546
    %vm548 = vcmp.eq.s32.totalorder %v75, %v546
    %v549 = vsel %vm547, 1, 0
    %v550 = vsel %vm548, 1, 0
    %v551 = vcvt.s32.f32 %v549
    %v552 = vcvt.s32.f32 %v550
    %v553 = vadd.f32 %v541, %v551
    %v554 = vadd.f32 %v542, %v552
    %v555 = vadd.s32 %v72, 134
    %556 = vset.pattern.permute.xlu0 15
    %557 = vperm.xlu0 %556, %v555
    %v558 = vpop.permute.xlu0 %557
    %vm559 = vcmp.eq.s32.totalorder %v74, %v558
    %vm560 = vcmp.eq.s32.totalorder %v75, %v558
    %v561 = vsel %vm559, 1, 0
    %v562 = vsel %vm560, 1, 0
    %v563 = vcvt.s32.f32 %v561
    %v564 = vcvt.s32.f32 %v562
    %v565 = vadd.f32 %v553, %v563
    %v566 = vadd.f32 %v554, %v564
    %v567 = vadd.s32 %v72, 138
    %568 = vset.pattern.permute.xlu0 16
    %569 = vperm.xlu0 %568, %v567
    %v570 = vpop.permute.xlu0 %569
    %vm571 = vcmp.eq.s32.totalorder %v74, %v570
    %vm572 = vcmp.eq.s32.totalorder %v75, %v570
    %v573 = vsel %vm571, 1, 0
    %v574 = vsel %vm572, 1, 0
    %v575 = vcvt.s32.f32 %v573
    %v576 = vcvt.s32.f32 %v574
    %v577 = vadd.f32 %v565, %v575
    %v578 = vadd.f32 %v566, %v576
    %v579 = vadd.s32 %v72, 142
    %580 = vset.pattern.permute.xlu0 17
    %581 = vperm.xlu0 %580, %v579
    %v582 = vpop.permute.xlu0 %581
    %vm583 = vcmp.eq.s32.totalorder %v74, %v582
    %vm584 = vcmp.eq.s32.totalorder %v75, %v582
    %v585 = vsel %vm583, 1, 0
    %v586 = vsel %vm584, 1, 0
    %v587 = vcvt.s32.f32 %v585
    %v588 = vcvt.s32.f32 %v586
    %v589 = vadd.f32 %v577, %v587
    %v590 = vadd.f32 %v578, %v588
    %v591 = vadd.s32 %v72, 146
    %592 = vset.pattern.permute.xlu0 18
    %593 = vperm.xlu0 %592, %v591
    %v594 = vpop.permute.xlu0 %593
    %vm595 = vcmp.eq.s32.totalorder %v74, %v594
    %vm596 = vcmp.eq.s32.totalorder %v75, %v594
    %v597 = vsel %vm595, 1, 0
    %v598 = vsel %vm596, 1, 0
    %v599 = vcvt.s32.f32 %v597
    %v600 = vcvt.s32.f32 %v598
    %v601 = vadd.f32 %v589, %v599
    %v602 = vadd.f32 %v590, %v600
    %v603 = vadd.s32 %v72, 182
    %604 = vset.pattern.permute.xlu0 22
    %605 = vperm.xlu0 %604, %v603
    %v606 = vpop.permute.xlu0 %605
    %vm607 = vcmp.eq.s32.totalorder %v74, %v606
    %vm608 = vcmp.eq.s32.totalorder %v75, %v606
    %v609 = vsel %vm607, 1, 0
    %v610 = vsel %vm608, 1, 0
    %v611 = vcvt.s32.f32 %v609
    %v612 = vcvt.s32.f32 %v610
    %v613 = vadd.f32 %v601, %v611
    %v614 = vadd.f32 %v602, %v612
    %v615 = vadd.s32 %v72, 187
    %616 = vset.pattern.permute.xlu0 23
    %617 = vperm.xlu0 %616, %v615
    %v618 = vpop.permute.xlu0 %617
    %vm619 = vcmp.eq.s32.totalorder %v74, %v618
    %vm620 = vcmp.eq.s32.totalorder %v75, %v618
    %v621 = vsel %vm619, 1, 0
    %v622 = vsel %vm620, 1, 0
    %v623 = vcvt.s32.f32 %v621
    %v624 = vcvt.s32.f32 %v622
    %v625 = vadd.f32 %v613, %v623
    %v626 = vadd.f32 %v614, %v624
    %v627 = vadd.s32 %v72, 192
    %628 = vset.pattern.permute.xlu0 24
    %629 = vperm.xlu0 %628, %v627
    %v630 = vpop.permute.xlu0 %629
    %vm631 = vcmp.eq.s32.totalorder %v74, %v630
    %vm632 = vcmp.eq.s32.totalorder %v75, %v630
    %v633 = vsel %vm631, 1, 0
    %v634 = vsel %vm632, 1, 0
    %v635 = vcvt.s32.f32 %v633
    %v636 = vcvt.s32.f32 %v634
    %v637 = vadd.f32 %v625, %v635
    %v638 = vadd.f32 %v626, %v636
    %v639 = vadd.s32 %v72, 219
    %640 = vset.pattern.permute.xlu0 27
    %641 = vperm.xlu0 %640, %v639
    %v642 = vpop.permute.xlu0 %641
    %vm643 = vcmp.eq.s32.totalorder %v74, %v642
    %vm644 = vcmp.eq.s32.totalorder %v75, %v642
    %v645 = vsel %vm643, 1, 0
    %v646 = vsel %vm644, 1, 0
    %v647 = vcvt.s32.f32 %v645
    %v648 = vcvt.s32.f32 %v646
    %v649 = vadd.f32 %v637, %v647
    %v650 = vadd.f32 %v638, %v648
    %v651 = vadd.s32 %v72, 222
    %652 = vset.pattern.permute.xlu0 28
    %653 = vperm.xlu0 %652, %v651
    %v654 = vpop.permute.xlu0 %653
    %vm655 = vcmp.eq.s32.totalorder %v74, %v654
    %vm656 = vcmp.eq.s32.totalorder %v75, %v654
    %v657 = vsel %vm655, 1, 0
    %v658 = vsel %vm656, 1, 0
    %v659 = vcvt.s32.f32 %v657
    %v660 = vcvt.s32.f32 %v658
    %v661 = vadd.f32 %v649, %v659
    %v662 = vadd.f32 %v650, %v660
    %v665 = vcombine.low %v661, %v662
    %v667 = vunpack.c.l.s4 1983009808
    %v668 = vunpack.c.0.s8 %v667
    %v669 = vlaneseq
    %v670 = vshrl.u32 %v669, 7
    %v671 = vsub.s32 %v668, %v670
    %v672 = vrot.slane %v665, %v671
    %674 = vst [vmem:[#allocation10] sm:$0xf] %v672
    // Predicated region
    $region34: #{tpu_custom_call.1} parent=1 // pred_check
      _
    $region35: #{tpu_custom_call.1} parent=1 // pred_check_branch
      %676 = sbr.rel (0) target = $region37
    $region36: #{tpu_custom_call.1} parent=1 // pred_region
      %s678 = ssub.s32 64, 64
      %679 = vsyncadd [#allocation4], %s678
      %s681 = sshll.u32 [#allocation10], 4
      %s682 = int_to_ptr.vmem [resolvable:$true] %s681
      %684 = dma.vmem_to_hbm [thread:$0]  %s682, 64, %s4, [#allocation4]
    $region37: #{tpu_custom_call.1} parent=1 // pred_fallthru
      _
    // Predicated region
    $region38: #{tpu_custom_call.1} parent=1 // pred_check
      _
    $region39: #{tpu_custom_call.1} parent=1 // pred_check_branch
      %686 = sbr.rel (0) target = $region41
    $region40: #{tpu_custom_call.1} parent=1 // pred_region
      %s688 = ssub.s32 64, 64
      %689 = vsyncadd [#allocation12], %s688
      %s691 = sshll.u32 [#allocation11], 4
      %s692 = int_to_ptr.vmem [resolvable:$true] %s691
      %694 = dma.vmem_to_hbm [thread:$0]  %s692, 64, %s5, [#allocation12]
    $region41: #{tpu_custom_call.1} parent=1 // pred_fallthru
      _
    // Predicated region
    $region42: #{tpu_custom_call.1} parent=1 // pred_check
      _
    $region43: #{tpu_custom_call.1} parent=1 // pred_check_branch
      %696 = sbr.rel (0) target = $region45
    $region44: #{tpu_custom_call.1} parent=1 // pred_region
      %697 = dma.done [#allocation4], 64
    $region45: #{tpu_custom_call.1} parent=1 // pred_fallthru
      _
    // Predicated region
    $region46: #{tpu_custom_call.1} parent=1 // pred_check
      _
    $region47: #{tpu_custom_call.1} parent=1 // pred_check_branch
      %699 = sbr.rel (0) target = $region49
    $region48: #{tpu_custom_call.1} parent=1 // pred_region
      %700 = dma.done [#allocation12], 64
    $region49: #{tpu_custom_call.1} parent=1 // pred_fallthru
      _
    %701 = vsyncpa [#allocation3], 1
    %702 = vsyncpa [#allocation6], 1
    %703 = vsyncpa [#allocation9], 1
    %704 = vsyncpa [#allocation4], 1
    %705 = vsyncpa [#allocation12], 1

</llo_original>
